<compile_context>
chip_gen: v7x
topology: tpu7x:2x2x1
jax: 0.10.0
libtpu: 0.0.40
codegen_flags: <defaults>
</compile_context>

<pallas_src>
import functools

import jax
import jax.numpy as jnp
from jax import lax
from jax.experimental import pallas as pl
from jax.experimental.pallas import tpu as pltpu

_EPS = 1e-12  # torch.nn.functional.normalize default


def _ijepa_loss_kernel(pred_ref, tgt_ref, out_ref, *, total_rows, tile_m,
                       chunk_m, steps_per_split, needs_mask):
    s = pl.program_id(0)  # split (one per TensorCore on v7x)
    j = pl.program_id(1)  # step within the split (reduction axis)

    @pl.when(j == 0)
    def _init():
        out_ref[...] = jnp.zeros_like(out_ref)

    # Unclamped global tile index (the index_map clamps the DMA; the mask here
    # uses the unclamped value so padded / duplicated tiles contribute zero).
    row0 = (s * steps_per_split + j) * tile_m
    num_chunks = tile_m // chunk_m
    eps2 = jnp.float32(_EPS * _EPS)

    def chunk_body(c, acc):
        off = pl.multiple_of(c * chunk_m, chunk_m)
        # Native-dtype tiles in VMEM; f32 upcast only chunk-by-chunk.
        p = pred_ref[pl.ds(off, chunk_m), :].astype(jnp.float32)
        t = tgt_ref[pl.ds(off, chunk_m), :].astype(jnp.float32)

        dot = jnp.sum(p * t, axis=-1, keepdims=True)  # (chunk_m, 1)
        pp = jnp.sum(p * p, axis=-1, keepdims=True)
        tt = jnp.sum(t * t, axis=-1, keepdims=True)

        # max on squared norms with eps^2 preserves torch's max(||x||, eps).
        inv = lax.rsqrt(jnp.maximum(pp, eps2)) * lax.rsqrt(jnp.maximum(tt, eps2))
        sim = dot * inv                                # (chunk_m, 1)

        if needs_mask:
            row = row0 + off + lax.broadcasted_iota(jnp.int32, (chunk_m, 1), 0)
            sim = jnp.where(row < total_rows, sim, jnp.float32(0.0))

        return acc + jnp.sum(sim, axis=0, keepdims=True)  # (1, 1)

    partial = lax.fori_loop(0, num_chunks, chunk_body,
                            jnp.zeros((1, 1), jnp.float32), unroll=True)

    # Accumulate directly into this split's resident output block; every
    # element of the (1, 8, 128) block ends up holding the split's partial sum.
    out_ref[...] += partial


def _vmem_capacity_bytes():
    try:
        return int(pltpu.get_tpu_info().vmem_capacity_bytes)
    except Exception:
        return 128 * 1024 * 1024  # conservative v5e/v6e default


def _choose_tiling(m, c, itemsize, vmem_cap, tile_m=None):
    """Pick (tile_m, chunk_m): large DMA blocks, small f32 compute chunks."""
    align = 8 * max(1, 4 // itemsize)          # 8 f32, 16 bf16, 32 int8/fp8
    # Inner compute chunk: keep each f32 temporary around <=1 MiB.
    chunk_m = (1 << 20) // (c * 4)
    chunk_m = max(align, min((chunk_m // align) * align, 1024))

    if tile_m is None:
        # ~35% of VMEM for 2 inputs x 2 pipeline buffers; 8 MiB/block cap.
        budget_rows = (vmem_cap * 35 // 100) // (4 * c * itemsize)
        cap_rows = (8 << 20) // (c * itemsize)
        tile_m = max(align, min(budget_rows, cap_rows))

    if tile_m >= m:
        if m <= chunk_m:
            return m, m                         # single block, single chunk
        if m % chunk_m == 0:
            return m, chunk_m                   # single block, chunked compute
        tile_m = (m // chunk_m) * chunk_m       # ragged last grid tile instead
        return tile_m, chunk_m

    chunk_m = max(align, (min(chunk_m, tile_m) // align) * align)
    tile_m = max(chunk_m, (tile_m // chunk_m) * chunk_m)
    return tile_m, chunk_m


def ijepa_loss(predicted_features, target_features, tile_m=None):
    """Pallas TPU IJEPALoss.forward.  Returns a scalar f32 loss.

    Caller contract: pass features in their native (possibly bf16) dtype; do
    NOT pre-upcast to f32 -- the kernel upcasts per chunk and the op is HBM
    bandwidth bound, so halving the bytes roughly halves the wall-clock.
    """
    assert predicted_features.shape == target_features.shape
    B, N, C = predicted_features.shape
    M = B * N

    p2 = predicted_features.reshape(M, C)  # free: C stays the lane axis
    t2 = target_features.reshape(M, C)

    itemsize = jnp.dtype(p2.dtype).itemsize
    vmem_cap = _vmem_capacity_bytes()
    tile_m, chunk_m = _choose_tiling(M, C, itemsize, vmem_cap, tile_m)

    total_tiles = pl.cdiv(M, tile_m)
    num_splits = 2 if total_tiles >= 2 else 1   # one partial per TC on v7x
    steps_per_split = pl.cdiv(total_tiles, num_splits)
    needs_mask = (num_splits * steps_per_split * tile_m) != M
    last_tile = total_tiles - 1

    def in_map(s, j):
        # Clamp so padded grid steps re-read an in-bounds tile (fully masked).
        return (jnp.minimum(s * steps_per_split + j, last_tile), 0)

    kernel = functools.partial(
        _ijepa_loss_kernel, total_rows=M, tile_m=tile_m, chunk_m=chunk_m,
        steps_per_split=steps_per_split, needs_mask=needs_mask)

    cost = pl.CostEstimate(
        flops=6 * M * C,
        transcendentals=2 * M,
        bytes_accessed=2 * M * C * itemsize + num_splits * 8 * 128 * 4,
    )

    partials = pl.pallas_call(
        kernel,
        out_shape=jax.ShapeDtypeStruct((num_splits, 8, 128), jnp.float32),
        grid_spec=pltpu.PrefetchScalarGridSpec(
            num_scalar_prefetch=0,
            grid=(num_splits, steps_per_split),
            in_specs=[
                pl.BlockSpec((tile_m, C), in_map),
                pl.BlockSpec((tile_m, C), in_map),
            ],
            out_specs=pl.BlockSpec((1, 8, 128), lambda s, j: (s, 0, 0)),
        ),
        compiler_params=pltpu.CompilerParams(
            dimension_semantics=("parallel", "arbitrary"),
            vmem_limit_bytes=int(vmem_cap * 3 // 4),
        ),
        cost_estimate=cost,
    )(p2, t2)

    # Each split's block is uniformly filled with its partial sum; combine and
    # apply the -1/M scale in plain JAX.
    return -(jnp.sum(partials[:, 0, 0]) / jnp.float32(M))


def _ijepa_loss_ref(predicted_features, target_features):
    """Pure-JAX reference matching the PyTorch module."""
    eps = 1e-12
    p = predicted_features.astype(jnp.float32)
    t = target_features.astype(jnp.float32)
    p = p / jnp.maximum(jnp.linalg.norm(p, axis=-1, keepdims=True), eps)
    t = t / jnp.maximum(jnp.linalg.norm(t, axis=-1, keepdims=True), eps)
    sim = jnp.einsum("bnc,bnc->bn", p, t)
    return -jnp.mean(sim)


if __name__ == "__main__":
    key = jax.random.PRNGKey(0)
    k1, k2, k3, k4, k5, k6 = jax.random.split(key, 6)

    # 1) Small single-tile case (batch, tokens, channels).
    B, N, C = 2, 8, 32
    predicted = jax.random.normal(k1, (B, N, C), dtype=jnp.float32)
    target = jax.random.normal(k2, (B, N, C), dtype=jnp.float32)
    loss = jax.block_until_ready(ijepa_loss(predicted, target))
    ref = jax.block_until_ready(_ijepa_loss_ref(predicted, target))
    assert jnp.allclose(loss, ref, atol=1e-5, rtol=1e-5), (loss, ref)

    # 2) Multi-tile + ragged last tile + dual-split accumulation path.
    B2, N2, C2 = 2, 50, 128
    p_big = jax.random.normal(k3, (B2, N2, C2), dtype=jnp.float32)
    t_big = jax.random.normal(k4, (B2, N2, C2), dtype=jnp.float32)
    loss_big = jax.block_until_ready(ijepa_loss(p_big, t_big, tile_m=16))
    ref_big = jax.block_until_ready(_ijepa_loss_ref(p_big, t_big))
    assert jnp.allclose(loss_big, ref_big, atol=1e-5, rtol=1e-5), (loss_big, ref_big)

    # 3) bf16 ingestion path (native sub-f32 dtype, exact tile division).
    B3, N3, C3 = 2, 64, 256
    p_bf = jax.random.normal(k5, (B3, N3, C3), dtype=jnp.float32).astype(jnp.bfloat16)
    t_bf = jax.random.normal(k6, (B3, N3, C3), dtype=jnp.float32).astype(jnp.bfloat16)
    loss_bf = jax.block_until_ready(ijepa_loss(p_bf, t_bf, tile_m=32))
    ref_bf = jax.block_until_ready(_ijepa_loss_ref(p_bf, t_bf))
    assert jnp.allclose(loss_bf, ref_bf, atol=1e-4, rtol=1e-4), (loss_bf, ref_bf)

    print("KERNEL_OK")
</pallas_src>

<mosaic_0001>
module attributes {stable_mosaic.version = 11 : i64} {
  func.func @_ijepa_loss_kernel(%arg0: i32, %arg1: i32, %arg2: memref<16x32xf32, #tpu.memory_space<vmem>>, %arg3: memref<16x32xf32, #tpu.memory_space<vmem>>, %arg4: memref<1x8x128xf32, #tpu.memory_space<vmem>>) attributes {dimension_semantics = [#tpu.dimension_semantics<parallel>, #tpu.dimension_semantics<arbitrary>], iteration_bounds = array<i64: 1, 1>, scalar_prefetch = 0 : i64, scratch_operands = 0 : i64, tpu.core_type = #tpu.core_type<tc>, window_params = [{transform_indices = @transform_0, window_bounds = array<i64: 16, 32>}, {transform_indices = @transform_1, window_bounds = array<i64: 16, 32>}, {transform_indices = @transform_2, window_bounds = array<i64: 1, 8, 128>}]} {
    %c0_i32 = arith.constant 0 : i32
    %0 = arith.cmpi eq, %arg1, %c0_i32 : i32
    %1 = arith.extui %0 : i1 to i32
    %c0_i32_0 = arith.constant 0 : i32
    %2 = arith.cmpi ne, %1, %c0_i32_0 : i32
    scf.if %2 {
      %cst_14 = arith.constant 0.000000e+00 : f32
      %35 = vector.broadcast %cst_14 : f32 to vector<1x8x128xf32>
      %c0_15 = arith.constant 0 : index
      %c0_16 = arith.constant 0 : index
      %c0_17 = arith.constant 0 : index
      %36 = vector.load %arg4[%c0_15, %c0_16, %c0_17] : memref<1x8x128xf32, #tpu.memory_space<vmem>>, vector<1x8x128xf32>
      tpu.vector_store %arg4[%c0_15, %c0_16, %c0_17], %35 {strides = array<i32>} : memref<1x8x128xf32, #tpu.memory_space<vmem>>, vector<1x8x128xf32>,
    } else {
    }
    %cst = arith.constant 0.000000e+00 : f32
    %3 = vector.broadcast %cst : f32 to vector<1x1xf32>
    %cst_1 = arith.constant 1.000000e-24 : f32
    %c0_i32_2 = arith.constant 0 : i32
    %c16_i32 = arith.constant 16 : i32
    %4 = arith.muli %c0_i32_2, %c16_i32 : i32
    %5 = tpu.assume_multiple %4, 16 : i32
    %6 = arith.index_cast %5 : i32 to index
    %c0 = arith.constant 0 : index
    %7 = vector.load %arg2[%6, %c0] : memref<16x32xf32, #tpu.memory_space<vmem>>, vector<16x32xf32>
    %8 = arith.index_cast %5 : i32 to index
    %c0_3 = arith.constant 0 : index
    %9 = vector.load %arg3[%8, %c0_3] : memref<16x32xf32, #tpu.memory_space<vmem>>, vector<16x32xf32>
    %10 = arith.mulf %7, %9 : vector<16x32xf32>
    %cst_4 = arith.constant dense<0.000000e+00> : vector<16xf32>
    %11 = vector.multi_reduction <add>, %10, %cst_4 [1] : vector<16x32xf32> to vector<16xf32>
    %12 = vector.shape_cast %11 : vector<16xf32> to vector<16x1xf32>
    %13 = arith.mulf %7, %7 : vector<16x32xf32>
    %cst_5 = arith.constant dense<0.000000e+00> : vector<16xf32>
    %14 = vector.multi_reduction <add>, %13, %cst_5 [1] : vector<16x32xf32> to vector<16xf32>
    %15 = vector.shape_cast %14 : vector<16xf32> to vector<16x1xf32>
    %16 = arith.mulf %9, %9 : vector<16x32xf32>
    %cst_6 = arith.constant dense<0.000000e+00> : vector<16xf32>
    %17 = vector.multi_reduction <add>, %16, %cst_6 [1] : vector<16x32xf32> to vector<16xf32>
    %18 = vector.shape_cast %17 : vector<16xf32> to vector<16x1xf32>
    %19 = vector.broadcast %cst_1 : f32 to vector<16x1xf32>
    %20 = arith.maximumf %15, %19 : vector<16x1xf32>
    %21 = math.rsqrt %20 : vector<16x1xf32>
    %22 = vector.broadcast %cst_1 : f32 to vector<16x1xf32>
    %23 = arith.maximumf %18, %22 : vector<16x1xf32>
    %24 = math.rsqrt %23 : vector<16x1xf32>
    %25 = arith.mulf %21, %24 : vector<16x1xf32>
    %26 = arith.mulf %12, %25 : vector<16x1xf32>
    %cst_7 = arith.constant dense<0.000000e+00> : vector<1xf32>
    %27 = vector.multi_reduction <add>, %26, %cst_7 [0] : vector<16x1xf32> to vector<1xf32>
    %28 = vector.shape_cast %27 : vector<1xf32> to vector<1x1xf32>
    %29 = arith.addf %3, %28 : vector<1x1xf32>
    %c1_i32 = arith.constant 1 : i32
    %c0_8 = arith.constant 0 : index
    %c0_9 = arith.constant 0 : index
    %c0_10 = arith.constant 0 : index
    %30 = vector.load %arg4[%c0_8, %c0_9, %c0_10] : memref<1x8x128xf32, #tpu.memory_space<vmem>>, vector<1x8x128xf32>
    %31 = vector.shape_cast %29 : vector<1x1xf32> to vector<1x1x1xf32>
    %32 = vector.broadcast %31 : vector<1x1x1xf32> to vector<1x8x128xf32>
    %33 = arith.addf %30, %32 : vector<1x8x128xf32>
    %c0_11 = arith.constant 0 : index
    %c0_12 = arith.constant 0 : index
    %c0_13 = arith.constant 0 : index
    %34 = vector.load %arg4[%c0_11, %c0_12, %c0_13] : memref<1x8x128xf32, #tpu.memory_space<vmem>>, vector<1x8x128xf32>
    tpu.vector_store %arg4[%c0_11, %c0_12, %c0_13], %33 {strides = array<i32>} : memref<1x8x128xf32, #tpu.memory_space<vmem>>, vector<1x8x128xf32>,
    return
  }
  func.func @transform_0(%arg0: i32, %arg1: i32) -> (i32, i32) {
    %c1_i32 = arith.constant 1 : i32
    %0 = arith.muli %arg0, %c1_i32 : i32
    %1 = arith.addi %0, %arg1 : i32
    %c0_i32 = arith.constant 0 : i32
    %2 = arith.minsi %1, %c0_i32 : i32
    %c0_i32_0 = arith.constant 0 : i32
    %c0_i32_1 = arith.constant 0 : i32
    return %2, %c0_i32_0 : i32, i32
  }
  func.func @transform_1(%arg0: i32, %arg1: i32) -> (i32, i32) {
    %c1_i32 = arith.constant 1 : i32
    %0 = arith.muli %arg0, %c1_i32 : i32
    %1 = arith.addi %0, %arg1 : i32
    %c0_i32 = arith.constant 0 : i32
    %2 = arith.minsi %1, %c0_i32 : i32
    %c0_i32_0 = arith.constant 0 : i32
    %c0_i32_1 = arith.constant 0 : i32
    return %2, %c0_i32_0 : i32, i32
  }
  func.func @transform_2(%arg0: i32, %arg1: i32) -> (i32, i32, i32) {
    %c0_i32 = arith.constant 0 : i32
    %c0_i32_0 = arith.constant 0 : i32
    %c0_i32_1 = arith.constant 0 : i32
    return %arg0, %c0_i32, %c0_i32_0 : i32, i32, i32
  }
}

</mosaic_0001>

<llo_original>
// kernel: tpu_custom_call.1
$region0: #{tpu_custom_call.1}
  #allocation0 [shape = 'u32[]', space=smem, size = 0x4, offset = 0x4, fixed_abs, tag = 'smem constant byte address 0x4 - core index']
  #allocation1 [shape = 'u32[144,128]{1,0:T(1,128)}', space=vmem, size = 0x12000, scoped, tag = 'internal scratch']
  %s0 = inlined_call_operand.hbm [shape: f32[16,32], index: 0, kind: input, shape index: {}]
  %s1 = inlined_call_operand.hbm [shape: f32[16,32], index: 1, kind: input, shape index: {}]
  %s2 = inlined_call_operand.hbm [shape: f32[1,8,128], index: 2, kind: output, shape index: {}]
  %s3 = sld [smem:[#allocation0]]
  $region30: #{tpu_custom_call.1} parent=0
    _
  %s5 = ssub.s32 1, %s3
  %s6 = scalar_select 0, %s5, %s3
  $region1: #{tpu_custom_call.1} parent=0
    #allocation2 [shape = 'u8[8192]{0}', space=vmem, size = 0x2000, scoped, tag = 'input window, operand 0, single buffered']
    #allocation3 [shape = 's32[1]{0}', space=sflag, size = 0x4, scoped, tag = 'scoped memory for tpu_custom_call.1']
    #allocation4 [shape = 's32[1]{0}', space=sflag, size = 0x4, scoped, tag = 'scoped memory for tpu_custom_call.1']
    #allocation5 [shape = 'u8[8192]{0}', space=vmem, size = 0x2000, scoped, tag = 'input window, operand 1, single buffered']
    #allocation6 [shape = 's32[1]{0}', space=sflag, size = 0x4, scoped, tag = 'scoped memory for tpu_custom_call.1']
    #allocation7 [shape = 'u8[4096]{0}', space=vmem, size = 0x1000, scoped, tag = 'output window, operand 0, single buffered']
    %7 = vsyncpa [#allocation3], 0
    %8 = vsyncpa [#allocation6], 0
    %9 = vsyncpa [#allocation4], 0
    // Predicated region
    $region2: #{tpu_custom_call.1} parent=1 // pred_check
      _
    $region3: #{tpu_custom_call.1} parent=1 // pred_check_branch
      %11 = sbr.rel (0) target = $region5
    $region4: #{tpu_custom_call.1} parent=1 // pred_region
      %s12 = sadd.s32 0, 0
      %p13 = scmp.lt.s32.totalorder %s12, 0
      %s14 = scalar_select %p13, %s12, 0
      %s15 = smul.u32 2, %s14
      %s17 = ssub.s32 256, 256
      %18 = vsyncadd [#allocation3], %s17
      %s19 = smul.addr %s15, 128
      %s20 = scalar_lea.hbm %s0, %s19
      %s21 = sshll.u32 [#allocation2], 4
      %s22 = int_to_ptr.vmem [resolvable:$true] %s21
      %27 = dma.hbm_to_vmem [thread:$0]  %s20, 256, %s22, [#allocation3], 128, 128, 8
    $region5: #{tpu_custom_call.1} parent=1 // pred_fallthru
      _
    // Predicated region
    $region6: #{tpu_custom_call.1} parent=1 // pred_check
      _
    $region7: #{tpu_custom_call.1} parent=1 // pred_check_branch
      %29 = sbr.rel (0) target = $region9
    $region8: #{tpu_custom_call.1} parent=1 // pred_region
      %s30 = sadd.s32 0, 0
      %p31 = scmp.lt.s32.totalorder %s30, 0
      %s32 = scalar_select %p31, %s30, 0
      %s33 = smul.u32 2, %s32
      %s35 = ssub.s32 256, 256
      %36 = vsyncadd [#allocation6], %s35
      %s37 = smul.addr %s33, 128
      %s38 = scalar_lea.hbm %s1, %s37
      %s39 = sshll.u32 [#allocation5], 4
      %s40 = int_to_ptr.vmem [resolvable:$true] %s39
      %45 = dma.hbm_to_vmem [thread:$0]  %s38, 256, %s40, [#allocation6], 128, 128, 8
    $region9: #{tpu_custom_call.1} parent=1 // pred_fallthru
      _
    // Predicated region
    $region10: #{tpu_custom_call.1} parent=1 // pred_check
      _
    $region11: #{tpu_custom_call.1} parent=1 // pred_check_branch
      %47 = sbr.rel (0) target = $region13
    $region12: #{tpu_custom_call.1} parent=1 // pred_region
      %48 = dma.done [#allocation3], 256
    $region13: #{tpu_custom_call.1} parent=1 // pred_fallthru
      _
    // Predicated region
    $region14: #{tpu_custom_call.1} parent=1 // pred_check
      _
    $region15: #{tpu_custom_call.1} parent=1 // pred_check_branch
      %50 = sbr.rel (0) target = $region17
    $region16: #{tpu_custom_call.1} parent=1 // pred_region
      %51 = dma.done [#allocation6], 256
    $region17: #{tpu_custom_call.1} parent=1 // pred_fallthru
      _
    %s52 = sadd.s32 0, 0
    %p53 = scmp.lt.s32.totalorder %s52, 0
    %s54 = scalar_select %p53, %s52, 0
    %s55 = smul.u32 2, %s54
    %s56 = sadd.s32 0, 0
    %p57 = scmp.lt.s32.totalorder %s56, 0
    %s58 = scalar_select %p57, %s56, 0
    %s59 = smul.u32 2, %s58
    %p60 = scmp.eq.s32.totalorder 0, 0
    // Predicated region
    $region18: #{tpu_custom_call.1} parent=1 // pred_check
      %p61 = pneg %p60
    $region19: #{tpu_custom_call.1} parent=1 // pred_check_branch
      %63 = sbr.rel (%p61) target = $region21
    $region20: #{tpu_custom_call.1} parent=1 // pred_region
      %64 = vst [vmem:[#allocation7] sm:$0xff] 0.0
    $region21: #{tpu_custom_call.1} parent=1 // pred_fallthru
      _
    %v65 = vld [vmem:[#allocation2] sm:$0xff]
    %v66 = vld [vmem:[#allocation2 + $0x8] sm:$0xff]
    %v67 = vld [vmem:[#allocation5] sm:$0xff]
    %v68 = vld [vmem:[#allocation5 + $0x8] sm:$0xff]
    %v69 = vmul.f32 %v65, %v67
    %v70 = vmul.f32 %v66, %v68
    %vm71 = vcmask 261120
    %v72 = vsel %vm71, %v69, 0.0
    %73 = vadd.xlane.f32.xlu0 %v72
    %v74 = vpop.xlane.xlu0 %73
    %v75 = vsel %vm71, %v70, 0.0
    %76 = vadd.xlane.f32.xlu0 %v75
    %v77 = vpop.xlane.xlu0 %76
    %v78 = vmul.f32 %v65, %v65
    %v79 = vmul.f32 %v66, %v66
    %v80 = vsel %vm71, %v78, 0.0
    %81 = vadd.xlane.f32.xlu0 %v80
    %v82 = vpop.xlane.xlu0 %81
    %v83 = vsel %vm71, %v79, 0.0
    %84 = vadd.xlane.f32.xlu0 %v83
    %v85 = vpop.xlane.xlu0 %84
    %v86 = vmul.f32 %v67, %v67
    %v87 = vmul.f32 %v68, %v68
    %v88 = vsel %vm71, %v86, 0.0
    %89 = vadd.xlane.f32.xlu0 %v88
    %v90 = vpop.xlane.xlu0 %89
    %v91 = vsel %vm71, %v87, 0.0
    %92 = vadd.xlane.f32.xlu0 %v91
    %v93 = vpop.xlane.xlu0 %92
    %v94 = vmax.f32 %v82, 1e-24
    %v95 = vmax.f32 %v85, 1e-24
    %v96 = vrsqrt.pop %v94
    %v97 = vrsqrt.pop %v95
    %v98 = vmax.f32 %v90, 1e-24
    %v99 = vmax.f32 %v93, 1e-24
    %v100 = vrsqrt.pop %v98
    %v101 = vrsqrt.pop %v99
    %v102 = vmul.f32 %v96, %v100
    %v103 = vmul.f32 %v97, %v101
    %v104 = vmul.f32 %v74, %v102
    %v105 = vmul.f32 %v77, %v103
    %v106 = vadd.f32 %v104, %v105
    %v107 = vrot.slane %v106, 4
    %v108 = vadd.f32 %v106, %v107
    %v109 = vrot.slane %v108, 2
    %v110 = vadd.f32 %v108, %v109
    %v111 = vrot.slane %v110, 1
    %v112 = vadd.f32 %v110, %v111
    %v113 = vadd.f32 %v112, 0.0
    %v114 = vld [vmem:[#allocation7] sm:$0xff]
    %v115 = vadd.f32 %v114, %v113
    %116 = vst [vmem:[#allocation7] sm:$0xff] %v115
    // Predicated region
    $region22: #{tpu_custom_call.1} parent=1 // pred_check
      _
    $region23: #{tpu_custom_call.1} parent=1 // pred_check_branch
      %118 = sbr.rel (0) target = $region25
    $region24: #{tpu_custom_call.1} parent=1 // pred_region
      %s120 = ssub.s32 128, 128
      %121 = vsyncadd [#allocation4], %s120
      %s123 = sshll.u32 [#allocation7], 4
      %s124 = int_to_ptr.vmem [resolvable:$true] %s123
      %126 = dma.vmem_to_hbm [thread:$0]  %s124, 128, %s2, [#allocation4]
    $region25: #{tpu_custom_call.1} parent=1 // pred_fallthru
      _
    // Predicated region
    $region26: #{tpu_custom_call.1} parent=1 // pred_check
      _
    $region27: #{tpu_custom_call.1} parent=1 // pred_check_branch
      %128 = sbr.rel (0) target = $region29
    $region28: #{tpu_custom_call.1} parent=1 // pred_region
      %129 = dma.done [#allocation4], 128
    $region29: #{tpu_custom_call.1} parent=1 // pred_fallthru
      _
    %130 = vsyncpa [#allocation3], 1
    %131 = vsyncpa [#allocation6], 1
    %132 = vsyncpa [#allocation4], 1

</llo_original>
